<compile_context>
chip_gen: v6e
topology: v6e:2x2x1
jax: 0.10.0
libtpu: 0.0.40
codegen_flags: <defaults>
</compile_context>

<pallas_src>
import functools

import jax
import jax.numpy as jnp
from jax.experimental import pallas as pl
from jax.experimental.pallas import tpu as pltpu

HIDDEN = 128
_LANE = 128
_SUBLANE = 8


def _round_up(x, m):
    return (x + m - 1) // m * m


def _ngram_kernel(x_ref, w1_ref, b1_ref, w3_ref, b3_ref, w2_ref, b2_ref,
                  o_ref, h_ref, m_ref, l_ref, *, vocab, tile_n, v_pad):
    """Grid = (batch_tiles, vocab_tiles); vocab axis is the streamed reduction."""
    j = pl.program_id(1)
    nv = pl.num_programs(1)

    # Hidden activations + running log-sum-exp state: once per batch tile.
    @pl.when(j == 0)
    def _():
        h = jnp.dot(x_ref[...], w1_ref[...],
                    preferred_element_type=jnp.float32) + b1_ref[...]
        h = jnp.dot(h.astype(w3_ref.dtype), w3_ref[...],
                    preferred_element_type=jnp.float32) + b3_ref[...]
        h_ref[...] = h
        m_ref[...] = jnp.full_like(m_ref, -jnp.inf)
        l_ref[...] = jnp.zeros_like(l_ref)

    # Logits for this vocab tile (bf16 operands, f32 accumulation on the MXU).
    logits = jnp.dot(h_ref[...].astype(w2_ref.dtype), w2_ref[...],
                     preferred_element_type=jnp.float32) + b2_ref[...]

    # Mask padded vocab columns so they don't perturb the normalizer.
    if v_pad != vocab:
        col = j * tile_n + jax.lax.broadcasted_iota(jnp.int32, logits.shape, 1)
        logits = jnp.where(col < vocab, logits, -jnp.inf)

    # Online (streaming) max / sum-exp update.
    t_max = jnp.max(logits, axis=-1, keepdims=True)
    m_new = jnp.maximum(m_ref[...], t_max)
    l_ref[...] = (l_ref[...] * jnp.exp(m_ref[...] - m_new)
                  + jnp.sum(jnp.exp(logits - m_new), axis=-1, keepdims=True))
    m_ref[...] = m_new

    # Stash raw logits into the VMEM-resident output block.
    start = pl.multiple_of(j * tile_n, tile_n)
    o_ref[:, pl.ds(start, tile_n)] = logits.astype(o_ref.dtype)

    # After the last vocab tile, normalize in place: logits - m - log(l).
    @pl.when(j == nv - 1)
    def _():
        norm = m_ref[...] + jnp.log(l_ref[...])
        o_ref[...] = o_ref[...] - norm


def ngram_forward(x, params, *, tile_n=None, tile_b=128):
    """x flattens to (B, fea_len); B=1 reproduces the module's x.view(1, -1)."""
    w1, b1 = params["w1"], params["b1"]
    w3, b3 = params["w3"], params["b3"]
    w2, b2 = params["w2"], params["b2"]

    fea_len = w1.shape[0]
    vocab = w2.shape[1]

    x2 = jnp.asarray(x, jnp.float32).reshape(-1, fea_len)
    batch = x2.shape[0]

    # ---- padded / tiled sizes (lane-dense: multiples of (8, 128)) ----
    f_pad = _round_up(fea_len, _LANE)
    v_128 = _round_up(vocab, _LANE)
    tn = v_128 if tile_n is None else _round_up(tile_n, _LANE)
    tn = min(tn, 2048)
    v_pad = _round_up(v_128, tn)
    tb = min(_round_up(batch, _SUBLANE), tile_b)
    b_pad = _round_up(batch, tb)
    nb, nv = b_pad // tb, v_pad // tn

    # ---- pad + cast (weights streamed as bf16; biases stay f32) ----
    xp = jnp.zeros((b_pad, f_pad), jnp.bfloat16).at[:batch, :fea_len].set(
        x2.astype(jnp.bfloat16))
    w1p = jnp.zeros((f_pad, HIDDEN), jnp.bfloat16).at[:fea_len, :].set(
        w1.astype(jnp.bfloat16))
    w3p = w3.astype(jnp.bfloat16)
    w2p = jnp.zeros((HIDDEN, v_pad), jnp.bfloat16).at[:, :vocab].set(
        w2.astype(jnp.bfloat16))
    b1p = b1.reshape(1, HIDDEN).astype(jnp.float32)
    b3p = b3.reshape(1, HIDDEN).astype(jnp.float32)
    b2p = jnp.zeros((1, v_pad), jnp.float32).at[:, :vocab].set(
        b2.reshape(1, vocab).astype(jnp.float32))

    kernel = functools.partial(_ngram_kernel, vocab=vocab, tile_n=tn, v_pad=v_pad)

    flops = 2 * b_pad * (f_pad * HIDDEN + HIDDEN * HIDDEN + HIDDEN * v_pad)
    bytes_accessed = (2 * (xp.size + w1p.size + w3p.size + w2p.size)
                      + 4 * (b1p.size + b3p.size + b2p.size)
                      + 4 * b_pad * v_pad)

    # VMEM budget: resident out block + resident inputs + double-buffered W2 tile.
    vmem_bytes = (tb * v_pad * 4 + tb * f_pad * 2 + f_pad * HIDDEN * 2
                  + HIDDEN * HIDDEN * 2 + 2 * (HIDDEN * tn * 2 + tn * 4)
                  + 2 * HIDDEN * 4 + tb * HIDDEN * 4 + 2 * tb * 4)
    vmem_limit = int(min(max(2 * vmem_bytes, 4 << 20), 64 << 20))

    out_pad = pl.pallas_call(
        kernel,
        out_shape=jax.ShapeDtypeStruct((b_pad, v_pad), jnp.float32),
        grid_spec=pltpu.PrefetchScalarGridSpec(
            num_scalar_prefetch=0,
            grid=(nb, nv),
            in_specs=[
                pl.BlockSpec((tb, f_pad), lambda i, j: (i, 0)),       # x  (resident over vocab)
                pl.BlockSpec((f_pad, HIDDEN), lambda i, j: (0, 0)),   # W1 (resident)
                pl.BlockSpec((1, HIDDEN), lambda i, j: (0, 0)),       # b1
                pl.BlockSpec((HIDDEN, HIDDEN), lambda i, j: (0, 0)),  # W3 (resident)
                pl.BlockSpec((1, HIDDEN), lambda i, j: (0, 0)),       # b3
                pl.BlockSpec((HIDDEN, tn), lambda i, j: (0, j)),      # W2 (streamed, double-buffered)
                pl.BlockSpec((1, tn), lambda i, j: (0, j)),           # b2 (streamed)
            ],
            out_specs=pl.BlockSpec((tb, v_pad), lambda i, j: (i, 0)),
            scratch_shapes=[
                pltpu.VMEM((tb, HIDDEN), jnp.float32),  # hidden activations
                pltpu.VMEM((tb, 1), jnp.float32),       # running max
                pltpu.VMEM((tb, 1), jnp.float32),       # running sum-exp
            ],
        ),
        compiler_params=pltpu.CompilerParams(
            dimension_semantics=("parallel", "arbitrary"),
            vmem_limit_bytes=vmem_limit,
        ),
        cost_estimate=pl.CostEstimate(
            flops=flops, transcendentals=b_pad * v_pad,
            bytes_accessed=bytes_accessed),
    )(xp, w1p, b1p, w3p, b3p, w2p, b2p)

    return out_pad[:batch, :vocab]


def ngram_reference(x, params):
    """Pure-JAX reference using the same bf16-weight / f32-accumulate recipe."""
    fea_len = params["w1"].shape[0]
    x2 = jnp.asarray(x, jnp.float32).reshape(-1, fea_len).astype(jnp.bfloat16)
    w1 = params["w1"].astype(jnp.bfloat16)
    w3 = params["w3"].astype(jnp.bfloat16)
    w2 = params["w2"].astype(jnp.bfloat16)
    b1 = params["b1"].reshape(1, -1).astype(jnp.float32)
    b3 = params["b3"].reshape(1, -1).astype(jnp.float32)
    b2 = params["b2"].reshape(1, -1).astype(jnp.float32)
    h = jnp.dot(x2, w1, preferred_element_type=jnp.float32) + b1
    h = jnp.dot(h.astype(jnp.bfloat16), w3, preferred_element_type=jnp.float32) + b3
    logits = jnp.dot(h.astype(jnp.bfloat16), w2, preferred_element_type=jnp.float32) + b2
    return jax.nn.log_softmax(logits, axis=-1)


def init_params(key, fea_len, vocb_size):
    """Deterministic init mimicking nn.Linear's U(-1/sqrt(fan_in), 1/sqrt(fan_in))."""
    ks = jax.random.split(key, 6)

    def linear(kw, kb, fan_in, fan_out):
        bound = 1.0 / jnp.sqrt(jnp.float32(fan_in))
        w = jax.random.uniform(kw, (fan_in, fan_out), jnp.float32, -bound, bound)
        b = jax.random.uniform(kb, (1, fan_out), jnp.float32, -bound, bound)
        return w, b

    w1, b1 = linear(ks[0], ks[1], fea_len, HIDDEN)
    w3, b3 = linear(ks[2], ks[3], HIDDEN, HIDDEN)
    w2, b2 = linear(ks[4], ks[5], HIDDEN, vocb_size)
    return {"w1": w1, "b1": b1, "w3": w3, "b3": b3, "w2": w2, "b2": b2}


if __name__ == "__main__":
    # Small shapes consistent with the module: context of 2 tokens x 32-dim
    # embeddings -> fea_len = 64 (padded to 128 lanes); vocab = 1000 (padded to
    # 1024, exercises the -inf mask); batch = 4 contexts (padded to 8 rows).
    context_len, emb_dim = 2, 32
    fea_len = context_len * emb_dim
    vocab = 1000
    batch = 4

    key = jax.random.PRNGKey(0)
    k_x, k_p = jax.random.split(key)
    params = init_params(k_p, fea_len, vocab)
    x = jax.random.normal(k_x, (batch, context_len, emb_dim), jnp.float32)

    # tile_n=512 -> two vocab tiles, exercising the streamed online log-softmax.
    out = ngram_forward(x, params, tile_n=512)
    jax.block_until_ready(out)
    assert out.shape == (batch, vocab), out.shape

    ref = ngram_reference(x, params)
    err = float(jnp.max(jnp.abs(out - ref)))
    assert jnp.allclose(out, ref, atol=1e-4, rtol=1e-4), err

    # probabilities must sum to ~1 per row
    totals = jnp.sum(jnp.exp(out), axis=-1)
    assert jnp.allclose(totals, 1.0, atol=1e-3), totals

    # original module semantics: single context, x.view(1, -1)
    x1 = x[0]
    out1 = ngram_forward(x1, params)
    jax.block_until_ready(out1)
    assert out1.shape == (1, vocab), out1.shape
    assert jnp.allclose(out1, ref[:1], atol=1e-4, rtol=1e-4)

    print("KERNEL_OK")
</pallas_src>

<mosaic_0001>
module attributes {stable_mosaic.version = 11 : i64} {
  func.func @_ngram_kernel(%arg0: i32, %arg1: i32, %arg2: memref<8x128xbf16, #tpu.memory_space<vmem>>, %arg3: memref<128x128xbf16, #tpu.memory_space<vmem>>, %arg4: memref<1x128xf32, #tpu.memory_space<vmem>>, %arg5: memref<128x128xbf16, #tpu.memory_space<vmem>>, %arg6: memref<1x128xf32, #tpu.memory_space<vmem>>, %arg7: memref<128x512xbf16, #tpu.memory_space<vmem>>, %arg8: memref<1x512xf32, #tpu.memory_space<vmem>>, %arg9: memref<8x1024xf32, #tpu.memory_space<vmem>>, %arg10: memref<8x128xf32, #tpu.memory_space<vmem>>, %arg11: memref<8x1xf32, #tpu.memory_space<vmem>>, %arg12: memref<8x1xf32, #tpu.memory_space<vmem>>) attributes {dimension_semantics = [#tpu.dimension_semantics<parallel>, #tpu.dimension_semantics<arbitrary>], iteration_bounds = array<i64: 1, 2>, scalar_prefetch = 0 : i64, scratch_operands = 3 : i64, tpu.core_type = #tpu.core_type<tc>, window_params = [{transform_indices = @transform_0, window_bounds = array<i64: 8, 128>}, {pipeline_mode = #tpu.pipeline_mode<synchronous>, transform_indices = @transform_1, window_bounds = array<i64: 128, 128>}, {pipeline_mode = #tpu.pipeline_mode<synchronous>, transform_indices = @transform_2, window_bounds = array<i64: 1, 128>}, {pipeline_mode = #tpu.pipeline_mode<synchronous>, transform_indices = @transform_3, window_bounds = array<i64: 128, 128>}, {pipeline_mode = #tpu.pipeline_mode<synchronous>, transform_indices = @transform_4, window_bounds = array<i64: 1, 128>}, {transform_indices = @transform_5, window_bounds = array<i64: 128, 512>}, {transform_indices = @transform_6, window_bounds = array<i64: 1, 512>}, {transform_indices = @transform_7, window_bounds = array<i64: 8, 1024>}]} {
    %c0_i32 = arith.constant 0 : i32
    %0 = arith.cmpi eq, %arg1, %c0_i32 : i32
    %1 = arith.extui %0 : i1 to i32
    %c0_i32_0 = arith.constant 0 : i32
    %2 = arith.cmpi ne, %1, %c0_i32_0 : i32
    scf.if %2 {
      %c0_22 = arith.constant 0 : index
      %c0_23 = arith.constant 0 : index
      %42 = vector.load %arg2[%c0_22, %c0_23] : memref<8x128xbf16, #tpu.memory_space<vmem>>, vector<8x128xbf16>
      %c0_24 = arith.constant 0 : index
      %c0_25 = arith.constant 0 : index
      %43 = vector.load %arg3[%c0_24, %c0_25] : memref<128x128xbf16, #tpu.memory_space<vmem>>, vector<128x128xbf16>
      %cst_26 = arith.constant dense<0.000000e+00> : vector<8x128xf32>
      %44 = tpu.matmul %42, %43, %cst_26 {dimension_numbers = #tpu.dot_dimension_numbers<[1], [0], [0], [1], [0, 0, 1, 1], [], []>} : vector<8x128xbf16>, vector<128x128xbf16>, vector<8x128xf32> -> vector<8x128xf32>
      %c0_27 = arith.constant 0 : index
      %c0_28 = arith.constant 0 : index
      %45 = vector.load %arg4[%c0_27, %c0_28] : memref<1x128xf32, #tpu.memory_space<vmem>>, vector<1x128xf32>
      %46 = vector.broadcast %45 : vector<1x128xf32> to vector<8x128xf32>
      %47 = arith.addf %44, %46 : vector<8x128xf32>
      %48 = arith.truncf %47 : vector<8x128xf32> to vector<8x128xbf16>
      %c0_29 = arith.constant 0 : index
      %c0_30 = arith.constant 0 : index
      %49 = vector.load %arg5[%c0_29, %c0_30] : memref<128x128xbf16, #tpu.memory_space<vmem>>, vector<128x128xbf16>
      %cst_31 = arith.constant dense<0.000000e+00> : vector<8x128xf32>
      %50 = tpu.matmul %48, %49, %cst_31 {dimension_numbers = #tpu.dot_dimension_numbers<[1], [0], [0], [1], [0, 0, 1, 1], [], []>} : vector<8x128xbf16>, vector<128x128xbf16>, vector<8x128xf32> -> vector<8x128xf32>
      %c0_32 = arith.constant 0 : index
      %c0_33 = arith.constant 0 : index
      %51 = vector.load %arg6[%c0_32, %c0_33] : memref<1x128xf32, #tpu.memory_space<vmem>>, vector<1x128xf32>
      %52 = vector.broadcast %51 : vector<1x128xf32> to vector<8x128xf32>
      %53 = arith.addf %50, %52 : vector<8x128xf32>
      %c0_34 = arith.constant 0 : index
      %c0_35 = arith.constant 0 : index
      %54 = vector.load %arg10[%c0_34, %c0_35] : memref<8x128xf32, #tpu.memory_space<vmem>>, vector<8x128xf32>
      tpu.vector_store %arg10[%c0_34, %c0_35], %53 {strides = array<i32>} : memref<8x128xf32, #tpu.memory_space<vmem>>, vector<8x128xf32>,
      %cst_36 = arith.constant 0xFF800000 : f32
      %55 = vector.broadcast %cst_36 : f32 to vector<8x1xf32>
      %c0_37 = arith.constant 0 : index
      %c0_38 = arith.constant 0 : index
      %56 = vector.load %arg11[%c0_37, %c0_38] : memref<8x1xf32, #tpu.memory_space<vmem>>, vector<8x1xf32>
      tpu.vector_store %arg11[%c0_37, %c0_38], %55 {strides = array<i32>} : memref<8x1xf32, #tpu.memory_space<vmem>>, vector<8x1xf32>,
      %cst_39 = arith.constant 0.000000e+00 : f32
      %57 = vector.broadcast %cst_39 : f32 to vector<8x1xf32>
      %c0_40 = arith.constant 0 : index
      %c0_41 = arith.constant 0 : index
      %58 = vector.load %arg12[%c0_40, %c0_41] : memref<8x1xf32, #tpu.memory_space<vmem>>, vector<8x1xf32>
      tpu.vector_store %arg12[%c0_40, %c0_41], %57 {strides = array<i32>} : memref<8x1xf32, #tpu.memory_space<vmem>>, vector<8x1xf32>,
    } else {
    }
    %c0 = arith.constant 0 : index
    %c0_1 = arith.constant 0 : index
    %3 = vector.load %arg10[%c0, %c0_1] : memref<8x128xf32, #tpu.memory_space<vmem>>, vector<8x128xf32>
    %4 = arith.truncf %3 : vector<8x128xf32> to vector<8x128xbf16>
    %c0_2 = arith.constant 0 : index
    %c0_3 = arith.constant 0 : index
    %5 = vector.load %arg7[%c0_2, %c0_3] : memref<128x512xbf16, #tpu.memory_space<vmem>>, vector<128x512xbf16>
    %cst = arith.constant dense<0.000000e+00> : vector<8x512xf32>
    %6 = tpu.matmul %4, %5, %cst {dimension_numbers = #tpu.dot_dimension_numbers<[1], [0], [0], [1], [0, 0, 1, 1], [], []>} : vector<8x128xbf16>, vector<128x512xbf16>, vector<8x512xf32> -> vector<8x512xf32>
    %c0_4 = arith.constant 0 : index
    %c0_5 = arith.constant 0 : index
    %7 = vector.load %arg8[%c0_4, %c0_5] : memref<1x512xf32, #tpu.memory_space<vmem>>, vector<1x512xf32>
    %8 = vector.broadcast %7 : vector<1x512xf32> to vector<8x512xf32>
    %9 = arith.addf %6, %8 : vector<8x512xf32>
    %c512_i32 = arith.constant 512 : i32
    %10 = arith.muli %arg1, %c512_i32 : i32
    %11 = tpu.iota {dimensions = array<i32: 1>} : vector<8x512xi32>
    %12 = vector.broadcast %10 : i32 to vector<8x512xi32>
    %13 = arith.addi %12, %11 : vector<8x512xi32>
    %c1000_i32 = arith.constant 1000 : i32
    %14 = vector.broadcast %c1000_i32 : i32 to vector<8x512xi32>
    %15 = arith.cmpi slt, %13, %14 : vector<8x512xi32>
    %cst_6 = arith.constant 0xFF800000 : f32
    %16 = vector.broadcast %cst_6 : f32 to vector<8x512xf32>
    %17 = arith.select %15, %9, %16 : vector<8x512xi1>, vector<8x512xf32>
    %cst_7 = arith.constant dense<0xFF800000> : vector<8xf32>
    %18 = vector.multi_reduction <maximumf>, %17, %cst_7 [1] : vector<8x512xf32> to vector<8xf32>
    %19 = vector.shape_cast %18 : vector<8xf32> to vector<8x1xf32>
    %c0_8 = arith.constant 0 : index
    %c0_9 = arith.constant 0 : index
    %20 = vector.load %arg11[%c0_8, %c0_9] : memref<8x1xf32, #tpu.memory_space<vmem>>, vector<8x1xf32>
    %21 = arith.maximumf %20, %19 : vector<8x1xf32>
    %c0_10 = arith.constant 0 : index
    %c0_11 = arith.constant 0 : index
    %22 = vector.load %arg12[%c0_10, %c0_11] : memref<8x1xf32, #tpu.memory_space<vmem>>, vector<8x1xf32>
    %c0_12 = arith.constant 0 : index
    %c0_13 = arith.constant 0 : index
    %23 = vector.load %arg11[%c0_12, %c0_13] : memref<8x1xf32, #tpu.memory_space<vmem>>, vector<8x1xf32>
    %24 = arith.subf %23, %21 : vector<8x1xf32>
    %25 = math.exp %24 : vector<8x1xf32>
    %26 = arith.mulf %22, %25 : vector<8x1xf32>
    %27 = vector.broadcast %21 : vector<8x1xf32> to vector<8x512xf32>
    %28 = arith.subf %17, %27 : vector<8x512xf32>
    %29 = math.exp %28 : vector<8x512xf32>
    %cst_14 = arith.constant dense<0.000000e+00> : vector<8xf32>
    %30 = vector.multi_reduction <add>, %29, %cst_14 [1] : vector<8x512xf32> to vector<8xf32>
    %31 = vector.shape_cast %30 : vector<8xf32> to vector<8x1xf32>
    %32 = arith.addf %26, %31 : vector<8x1xf32>
    %c0_15 = arith.constant 0 : index
    %c0_16 = arith.constant 0 : index
    %33 = vector.load %arg12[%c0_15, %c0_16] : memref<8x1xf32, #tpu.memory_space<vmem>>, vector<8x1xf32>
    tpu.vector_store %arg12[%c0_15, %c0_16], %32 {strides = array<i32>} : memref<8x1xf32, #tpu.memory_space<vmem>>, vector<8x1xf32>,
    %c0_17 = arith.constant 0 : index
    %c0_18 = arith.constant 0 : index
    %34 = vector.load %arg11[%c0_17, %c0_18] : memref<8x1xf32, #tpu.memory_space<vmem>>, vector<8x1xf32>
    tpu.vector_store %arg11[%c0_17, %c0_18], %21 {strides = array<i32>} : memref<8x1xf32, #tpu.memory_space<vmem>>, vector<8x1xf32>,
    %c512_i32_19 = arith.constant 512 : i32
    %35 = arith.muli %arg1, %c512_i32_19 : i32
    %36 = tpu.assume_multiple %35, 512 : i32
    %c0_20 = arith.constant 0 : index
    %37 = arith.index_cast %36 : i32 to index
    %38 = vector.load %arg9[%c0_20, %37] : memref<8x1024xf32, #tpu.memory_space<vmem>>, vector<8x512xf32>
    tpu.vector_store %arg9[%c0_20, %37], %17 {strides = array<i32>} : memref<8x1024xf32, #tpu.memory_space<vmem>>, vector<8x512xf32>,
    %c1_i32 = arith.constant 1 : i32
    %39 = arith.cmpi eq, %arg1, %c1_i32 : i32
    %40 = arith.extui %39 : i1 to i32
    %c0_i32_21 = arith.constant 0 : i32
    %41 = arith.cmpi ne, %40, %c0_i32_21 : i32
    scf.if %41 {
      %c0_22 = arith.constant 0 : index
      %c0_23 = arith.constant 0 : index
      %42 = vector.load %arg11[%c0_22, %c0_23] : memref<8x1xf32, #tpu.memory_space<vmem>>, vector<8x1xf32>
      %c0_24 = arith.constant 0 : index
      %c0_25 = arith.constant 0 : index
      %43 = vector.load %arg12[%c0_24, %c0_25] : memref<8x1xf32, #tpu.memory_space<vmem>>, vector<8x1xf32>
      %44 = math.log %43 : vector<8x1xf32>
      %45 = arith.addf %42, %44 : vector<8x1xf32>
      %c0_26 = arith.constant 0 : index
      %c0_27 = arith.constant 0 : index
      %46 = vector.load %arg9[%c0_26, %c0_27] : memref<8x1024xf32, #tpu.memory_space<vmem>>, vector<8x1024xf32>
      %47 = vector.broadcast %45 : vector<8x1xf32> to vector<8x1024xf32>
      %48 = arith.subf %46, %47 : vector<8x1024xf32>
      %c0_28 = arith.constant 0 : index
      %c0_29 = arith.constant 0 : index
      %49 = vector.load %arg9[%c0_28, %c0_29] : memref<8x1024xf32, #tpu.memory_space<vmem>>, vector<8x1024xf32>
      tpu.vector_store %arg9[%c0_28, %c0_29], %48 {strides = array<i32>} : memref<8x1024xf32, #tpu.memory_space<vmem>>, vector<8x1024xf32>,
    } else {
    }
    return
  }
  func.func @transform_0(%arg0: i32, %arg1: i32) -> (i32, i32) {
    %c0_i32 = arith.constant 0 : i32
    %c0_i32_0 = arith.constant 0 : i32
    return %arg0, %c0_i32 : i32, i32
  }
  func.func @transform_1(%arg0: i32, %arg1: i32) -> (i32, i32) {
    %c0_i32 = arith.constant 0 : i32
    %c0_i32_0 = arith.constant 0 : i32
    %c0_i32_1 = arith.constant 0 : i32
    return %c0_i32, %c0_i32_0 : i32, i32
  }
  func.func @transform_2(%arg0: i32, %arg1: i32) -> (i32, i32) {
    %c0_i32 = arith.constant 0 : i32
    %c0_i32_0 = arith.constant 0 : i32
    %c0_i32_1 = arith.constant 0 : i32
    return %c0_i32, %c0_i32_0 : i32, i32
  }
  func.func @transform_3(%arg0: i32, %arg1: i32) -> (i32, i32) {
    %c0_i32 = arith.constant 0 : i32
    %c0_i32_0 = arith.constant 0 : i32
    %c0_i32_1 = arith.constant 0 : i32
    return %c0_i32, %c0_i32_0 : i32, i32
  }
  func.func @transform_4(%arg0: i32, %arg1: i32) -> (i32, i32) {
    %c0_i32 = arith.constant 0 : i32
    %c0_i32_0 = arith.constant 0 : i32
    %c0_i32_1 = arith.constant 0 : i32
    return %c0_i32, %c0_i32_0 : i32, i32
  }
  func.func @transform_5(%arg0: i32, %arg1: i32) -> (i32, i32) {
    %c0_i32 = arith.constant 0 : i32
    %c0_i32_0 = arith.constant 0 : i32
    return %c0_i32, %arg1 : i32, i32
  }
  func.func @transform_6(%arg0: i32, %arg1: i32) -> (i32, i32) {
    %c0_i32 = arith.constant 0 : i32
    %c0_i32_0 = arith.constant 0 : i32
    return %c0_i32, %arg1 : i32, i32
  }
  func.func @transform_7(%arg0: i32, %arg1: i32) -> (i32, i32) {
    %c0_i32 = arith.constant 0 : i32
    %c0_i32_0 = arith.constant 0 : i32
    return %arg0, %c0_i32 : i32, i32
  }
}

</mosaic_0001>

<llo_original>
// kernel: tpu_custom_call.1
$region0: #{tpu_custom_call.1}
  #allocation0 [shape = 'u32[]', space=smem, size = 0x4, offset = 0x4, fixed_abs, tag = 'smem constant byte address 0x4 - core index']
  #allocation1 [shape = 'u32[144,128]{1,0:T(1,128)}', space=vmem, size = 0x12000, scoped, tag = 'internal scratch']
  #allocation2 [shape = 'f32[8,128]{1,0:T(8,128)}', space=vmem, size = 0x1000, scoped, tag = 'scratch operand']
  #allocation3 [shape = 'f32[8,1]{1,0:T(8,128)}', space=vmem, size = 0x1000, scoped, tag = 'scratch operand']
  #allocation4 [shape = 'f32[8,1]{1,0:T(8,128)}', space=vmem, size = 0x1000, scoped, tag = 'scratch operand']
  %s0 = inlined_call_operand.hbm [shape: bf16[8,128], index: 0, kind: input, shape index: {}]
  %s1 = inlined_call_operand.hbm [shape: bf16[128,128], index: 1, kind: input, shape index: {}]
  %s2 = inlined_call_operand.vmem [shape: f32[1,128], index: 2, kind: input, shape index: {}]
  %s3 = inlined_call_operand.hbm [shape: bf16[128,128], index: 3, kind: input, shape index: {}]
  %s4 = inlined_call_operand.vmem [shape: f32[1,128], index: 4, kind: input, shape index: {}]
  %s5 = inlined_call_operand.hbm [shape: bf16[128,1024], index: 5, kind: input, shape index: {}]
  %s6 = inlined_call_operand.vmem [shape: f32[1,1024], index: 6, kind: input, shape index: {}]
  %s7 = inlined_call_operand.hbm [shape: f32[8,1024], index: 7, kind: output, shape index: {}]
  %s8 = sld [smem:[#allocation0]]
  $region85: #{tpu_custom_call.1} parent=0
    _
  %s10 = ssub.s32 1, %s8
  %s11 = scalar_select 0, %s10, %s8
  $region1: #{tpu_custom_call.1} parent=0
    #allocation5 [shape = 'u8[2048]{0}', space=vmem, size = 0x800, scoped, tag = 'input window, operand 0, single buffered']
    #allocation6 [shape = 's32[2]{0}', space=sflag, size = 0x8, scoped, tag = 'scoped memory for tpu_custom_call.1']
    #allocation7 [shape = 's32[2]{0}', space=sflag, size = 0x8, scoped, tag = 'scoped memory for tpu_custom_call.1']
    #allocation8 [shape = 'u8[32768]{0}', space=vmem, size = 0x8000, scoped, tag = 'input window, operand 1, single buffered']
    #allocation9 [shape = 's32[1]{0}', space=sflag, size = 0x4, scoped, tag = 'scoped memory for tpu_custom_call.1']
    #allocation10 [shape = 'u8[32768]{0}', space=vmem, size = 0x8000, scoped, tag = 'input window, operand 3, single buffered']
    #allocation11 [shape = 'u8[262144]{0}', space=vmem, size = 0x40000, scoped, tag = 'input window, operand 5']
    #allocation12 [shape = 's32[2]{0}', space=sflag, size = 0x8, scoped, tag = 'scoped memory for tpu_custom_call.1']
    #allocation13 [shape = 'u8[32768]{0}', space=vmem, size = 0x8000, scoped, tag = 'output window, operand 0, single buffered']
    %12 = vsyncpa [#allocation6], 0
    %13 = vsyncpa [#allocation9], 0
    %14 = vsyncpa [#allocation12], 0
    %s15 = scalar_lea.sflag [#allocation12], 1
    %16 = vsyncpa %s15, 0
    %17 = vsyncpa [#allocation7], 0
    loop: start=0, step=1, limit=4
    $region2: #{tpu_custom_call.1} parent=1 // loop_pre_header
      _
    $region3: #{tpu_custom_call.1} parent=1 // loop_header
      %s19 = sphi 0, %s23
      %p20 = scmp.ge.s32.totalorder %s19, 4
      %s26 = sphi 0, %s38
      %s27 = sphi 0, %s34
      %s28 = sphi 0, %s26
      %s29 = sphi 0, %s27
      %s30 = sphi 0, %s28
      %s31 = sphi 0, %s29
      %s41 = sphi 0, %s43
      %s44 = sphi 0, %s41
      %s45 = sphi 0, %s44
      %s61 = sphi 0, %s45
      %s65 = sphi 0, %s65
      %s67 = sphi 0, %s65
      %s68 = sphi 0, %s67
      %s82 = sphi 0, %s68
      %s86 = sphi 0, %s86
      %s88 = sphi 0, %s86
      %s89 = sphi 0, %s88
      %s103 = sphi 0, %s89
      %s107 = sphi 0, %s107
      %s109 = sphi 0, %s107
      %s110 = sphi 0, %s109
      %s124 = sphi 0, %s110
      %s128 = sphi 0, %s128
      %s130 = sphi 0, %s128
      %s131 = sphi 0, %s130
      %s145 = sphi 0, %s131
      %s151 = sphi 0, %s153
      %s154 = sphi 0, %s151
      %s155 = sphi 0, %s154
      %s171 = sphi 0, %s155
      %s177 = sphi 0, %s179
      %s180 = sphi 0, %s177
      %s181 = sphi 0, %s180
      %s197 = sphi 0, %s181
      %s203 = sphi 0, %s205
      %s206 = sphi 0, %s203
      %s207 = sphi 0, %s206
      %s223 = sphi 0, %s207
    $region4: #{tpu_custom_call.1} parent=1 // loop_header_branch
      %22 = sbr.rel (%p20) target = $region8
    $region5: #{tpu_custom_call.1} parent=1 // loop_body
      %s24 = ssub.s32 %s19, 1
      %s25 = ssub.s32 %s19, 2
      %s32 = sadd.s32 1, %s27
      %p33 = scmp.ge.s32.totalorder %s32, 2
      %s34 = scalar_select %p33, 0, %s32
      %s35 = sadd.s32 1, %s26
      %s36 = scalar_select %p33, %s35, %s26
      %p37 = scmp.ge.s32.totalorder %s36, 1
      %s38 = scalar_select %p37, 0, %s36
      %s39 = ssub.s32 %s26, %s38
      %p40 = scmp.eq.s32.totalorder %s39, 0
      %s42 = sadd.s32 %s41, 1
      %s43 = scalar_select %p40, %s41, %s42
      %p46 = pneg %p40
      %p47 = scmp.eq.s32.totalorder %s19, 1
      %p48 = por %p46, %p47
      %p49 = scmp.ne.s32.totalorder %s41, %s44
      %p50 = scmp.eq.s32.totalorder %s19, 0
      %p51 = por %p49, %p50
      %p52 = scmp.ne.s32.totalorder %s41, %s44
      %p53 = scmp.eq.s32.totalorder %s24, 1
      %p54 = por %p52, %p53
      %p55 = scmp.ne.s32.totalorder %s44, %s45
      %p56 = scmp.eq.s32.totalorder %s24, 0
      %p57 = por %p55, %p56
      %p58 = scmp.ne.s32.totalorder %s44, %s45
      %p59 = scmp.eq.s32.totalorder %s25, 1
      %p60 = por %p58, %p59
      %p62 = scmp.ne.s32.totalorder %s45, %s61
      %p63 = scmp.eq.s32.totalorder %s25, 0
      %p64 = por %p62, %p63
      %s66 = sadd.s32 %s65, 1
      %p69 = scmp.eq.s32.totalorder %s19, 1
      %p70 = scmp.ne.s32.totalorder %s65, %s67
      %p71 = scmp.eq.s32.totalorder %s19, 0
      %p72 = por %p70, %p71
      %p73 = scmp.ne.s32.totalorder %s65, %s67
      %p74 = scmp.eq.s32.totalorder %s24, 1
      %p75 = por %p73, %p74
      %p76 = scmp.ne.s32.totalorder %s67, %s68
      %p77 = scmp.eq.s32.totalorder %s24, 0
      %p78 = por %p76, %p77
      %p79 = scmp.ne.s32.totalorder %s67, %s68
      %p80 = scmp.eq.s32.totalorder %s25, 1
      %p81 = por %p79, %p80
      %p83 = scmp.ne.s32.totalorder %s68, %s82
      %p84 = scmp.eq.s32.totalorder %s25, 0
      %p85 = por %p83, %p84
      %s87 = sadd.s32 %s86, 1
      %p90 = scmp.eq.s32.totalorder %s19, 1
      %p91 = scmp.ne.s32.totalorder %s86, %s88
      %p92 = scmp.eq.s32.totalorder %s19, 0
      %p93 = por %p91, %p92
      %p94 = scmp.ne.s32.totalorder %s86, %s88
      %p95 = scmp.eq.s32.totalorder %s24, 1
      %p96 = por %p94, %p95
      %p97 = scmp.ne.s32.totalorder %s88, %s89
      %p98 = scmp.eq.s32.totalorder %s24, 0
      %p99 = por %p97, %p98
      %p100 = scmp.ne.s32.totalorder %s88, %s89
      %p101 = scmp.eq.s32.totalorder %s25, 1
      %p102 = por %p100, %p101
      %p104 = scmp.ne.s32.totalorder %s89, %s103
      %p105 = scmp.eq.s32.totalorder %s25, 0
      %p106 = por %p104, %p105
      %s108 = sadd.s32 %s107, 1
      %p111 = scmp.eq.s32.totalorder %s19, 1
      %p112 = scmp.ne.s32.totalorder %s107, %s109
      %p113 = scmp.eq.s32.totalorder %s19, 0
      %p114 = por %p112, %p113
      %p115 = scmp.ne.s32.totalorder %s107, %s109
      %p116 = scmp.eq.s32.totalorder %s24, 1
      %p117 = por %p115, %p116
      %p118 = scmp.ne.s32.totalorder %s109, %s110
      %p119 = scmp.eq.s32.totalorder %s24, 0
      %p120 = por %p118, %p119
      %p121 = scmp.ne.s32.totalorder %s109, %s110
      %p122 = scmp.eq.s32.totalorder %s25, 1
      %p123 = por %p121, %p122
      %p125 = scmp.ne.s32.totalorder %s110, %s124
      %p126 = scmp.eq.s32.totalorder %s25, 0
      %p127 = por %p125, %p126
      %s129 = sadd.s32 %s128, 1
      %p132 = scmp.eq.s32.totalorder %s19, 1
      %p133 = scmp.ne.s32.totalorder %s128, %s130
      %p134 = scmp.eq.s32.totalorder %s19, 0
      %p135 = por %p133, %p134
      %p136 = scmp.ne.s32.totalorder %s128, %s130
      %p137 = scmp.eq.s32.totalorder %s24, 1
      %p138 = por %p136, %p137
      %p139 = scmp.ne.s32.totalorder %s130, %s131
      %p140 = scmp.eq.s32.totalorder %s24, 0
      %p141 = por %p139, %p140
      %p142 = scmp.ne.s32.totalorder %s130, %s131
      %p143 = scmp.eq.s32.totalorder %s25, 1
      %p144 = por %p142, %p143
      %p146 = scmp.ne.s32.totalorder %s131, %s145
      %p147 = scmp.eq.s32.totalorder %s25, 0
      %p148 = por %p146, %p147
      %s149 = ssub.s32 %s27, %s34
      %p150 = scmp.eq.s32.totalorder %s149, 0
      %s152 = sadd.s32 %s151, 1
      %s153 = scalar_select %p150, %s151, %s152
      %p156 = pneg %p150
      %p157 = scmp.eq.s32.totalorder %s19, 1
      %p158 = por %p156, %p157
      %p159 = scmp.ne.s32.totalorder %s151, %s154
      %p160 = scmp.eq.s32.totalorder %s19, 0
      %p161 = por %p159, %p160
      %p162 = scmp.ne.s32.totalorder %s151, %s154
      %p163 = scmp.eq.s32.totalorder %s24, 1
      %p164 = por %p162, %p163
      %p165 = scmp.ne.s32.totalorder %s154, %s155
      %p166 = scmp.eq.s32.totalorder %s24, 0
      %p167 = por %p165, %p166
      %p168 = scmp.ne.s32.totalorder %s154, %s155
      %p169 = scmp.eq.s32.totalorder %s25, 1
      %p170 = por %p168, %p169
      %p172 = scmp.ne.s32.totalorder %s155, %s171
      %p173 = scmp.eq.s32.totalorder %s25, 0
      %p174 = por %p172, %p173
      %s175 = ssub.s32 %s27, %s34
      %p176 = scmp.eq.s32.totalorder %s175, 0
      %s178 = sadd.s32 %s177, 1
      %s179 = scalar_select %p176, %s177, %s178
      %p182 = pneg %p176
      %p183 = scmp.eq.s32.totalorder %s19, 1
      %p184 = por %p182, %p183
      %p185 = scmp.ne.s32.totalorder %s177, %s180
      %p186 = scmp.eq.s32.totalorder %s19, 0
      %p187 = por %p185, %p186
      %p188 = scmp.ne.s32.totalorder %s177, %s180
      %p189 = scmp.eq.s32.totalorder %s24, 1
      %p190 = por %p188, %p189
      %p191 = scmp.ne.s32.totalorder %s180, %s181
      %p192 = scmp.eq.s32.totalorder %s24, 0
      %p193 = por %p191, %p192
      %p194 = scmp.ne.s32.totalorder %s180, %s181
      %p195 = scmp.eq.s32.totalorder %s25, 1
      %p196 = por %p194, %p195
      %p198 = scmp.ne.s32.totalorder %s181, %s197
      %p199 = scmp.eq.s32.totalorder %s25, 0
      %p200 = por %p198, %p199
      %s201 = ssub.s32 %s26, %s38
      %p202 = scmp.eq.s32.totalorder %s201, 0
      %s204 = sadd.s32 %s203, 1
      %s205 = scalar_select %p202, %s203, %s204
      %p208 = pneg %p202
      %p209 = scmp.eq.s32.totalorder %s19, 1
      %p210 = por %p208, %p209
      %p211 = scmp.ne.s32.totalorder %s203, %s206
      %p212 = scmp.eq.s32.totalorder %s19, 0
      %p213 = por %p211, %p212
      %p214 = scmp.ne.s32.totalorder %s203, %s206
      %p215 = scmp.eq.s32.totalorder %s24, 1
      %p216 = por %p214, %p215
      %p217 = scmp.ne.s32.totalorder %s206, %s207
      %p218 = scmp.eq.s32.totalorder %s24, 0
      %p219 = por %p217, %p218
      %p220 = scmp.ne.s32.totalorder %s206, %s207
      %p221 = scmp.eq.s32.totalorder %s25, 1
      %p222 = por %p220, %p221
      %p224 = scmp.ne.s32.totalorder %s207, %s223
      %p225 = scmp.eq.s32.totalorder %s25, 0
      %p226 = por %p224, %p225
      %p227 = scmp.le.s32.totalorder 1, %s19
      %p228 = scmp.lt.s32.totalorder %s19, 3
      %p229 = pnand %p227, %p228
      %p230 = pneg %p229
      // Predicated region
      $region9: #{tpu_custom_call.1} parent=5 // pred_check
        _
      $region10: #{tpu_custom_call.1} parent=5 // pred_check_branch
        %232 = sbr.rel (%p229) target = $region12
      $region11: #{tpu_custom_call.1} parent=5 // pred_region
        %s233 = ssub.s32 %s19, 1
        // Predicated region
        $region13: #{tpu_custom_call.1} parent=11 // pred_check
          %p234 = pneg %p57
        $region14: #{tpu_custom_call.1} parent=11 // pred_check_branch
          %236 = sbr.rel (%p234) target = $region16
        $region15: #{tpu_custom_call.1} parent=11 // pred_region
          %s238 = ssub.s32 64, 64
          %239 = vsyncadd [#allocation6], %s238
          %s240 = smul.addr %s28, 64
          %s241 = scalar_lea.hbm %s0, %s240
          %s243 = sshll.u32 [#allocation5], 4
          %s244 = int_to_ptr.vmem [resolvable:$true] %s243
          %246 = dma.hbm_to_vmem [thread:$0]  %s241, 64, %s244, [#allocation6]
        $region16: #{tpu_custom_call.1} parent=11 // pred_fallthru
          _
        // Predicated region
        $region17: #{tpu_custom_call.1} parent=11 // pred_check
          %p247 = pneg %p78
        $region18: #{tpu_custom_call.1} parent=11 // pred_check_branch
          %249 = sbr.rel (%p247) target = $region20
        $region19: #{tpu_custom_call.1} parent=11 // pred_region
          %s251 = ssub.s32 1024, 1024
          %252 = vsyncadd [#allocation9], %s251
          %s253 = sshll.u32 [#allocation8], 4
          %s254 = int_to_ptr.vmem [resolvable:$true] %s253
          %259 = dma.hbm_to_vmem [thread:$0]  %s1, 1024, %s254, [#allocation9], 64, 64, 4
        $region20: #{tpu_custom_call.1} parent=11 // pred_fallthru
          _
        // Predicated region
        $region21: #{tpu_custom_call.1} parent=11 // pred_check
          %p260 = pneg %p99
        $region22: #{tpu_custom_call.1} parent=11 // pred_check_branch
          %262 = sbr.rel (%p260) target = $region24
        $region23: #{tpu_custom_call.1} parent=11 // pred_region
          _
        $region24: #{tpu_custom_call.1} parent=11 // pred_fallthru
          _
        // Predicated region
        $region25: #{tpu_custom_call.1} parent=11 // pred_check
          %p263 = pneg %p120
        $region26: #{tpu_custom_call.1} parent=11 // pred_check_branch
          %265 = sbr.rel (%p263) target = $region28
        $region27: #{tpu_custom_call.1} parent=11 // pred_region
          %s267 = ssub.s32 1024, 1024
          %268 = vsyncadd [#allocation9], %s267
          %s269 = sshll.u32 [#allocation10], 4
          %s270 = int_to_ptr.vmem [resolvable:$true] %s269
          %275 = dma.hbm_to_vmem [thread:$0]  %s3, 1024, %s270, [#allocation9], 64, 64, 4
        $region28: #{tpu_custom_call.1} parent=11 // pred_fallthru
          _
        // Predicated region
        $region29: #{tpu_custom_call.1} parent=11 // pred_check
          %p276 = pneg %p141
        $region30: #{tpu_custom_call.1} parent=11 // pred_check_branch
          %278 = sbr.rel (%p276) target = $region32
        $region31: #{tpu_custom_call.1} parent=11 // pred_region
          _
        $region32: #{tpu_custom_call.1} parent=11 // pred_fallthru
          _
      $region12: #{tpu_custom_call.1} parent=5 // pred_fallthru
        _
      %p279 = scmp.lt.s32.totalorder %s19, 2
      // Predicated region
      $region33: #{tpu_custom_call.1} parent=5 // pred_check
        %p280 = pneg %p279
      $region34: #{tpu_custom_call.1} parent=5 // pred_check_branch
        %282 = sbr.rel (%p280) target = $region36
      $region35: #{tpu_custom_call.1} parent=5 // pred_region
        // Predicated region
        $region37: #{tpu_custom_call.1} parent=35 // pred_check
          %p283 = pneg %p161
        $region38: #{tpu_custom_call.1} parent=35 // pred_check_branch
          %285 = sbr.rel (%p283) target = $region40
        $region39: #{tpu_custom_call.1} parent=35 // pred_region
          %s286 = sand.u32 %s151, 1
          %s287 = scalar_lea.sflag [#allocation12], %s286
          %s288 = sand.u32 %s151, 1
          %s289 = smul.addr %s288, 256
          %s290 = scalar_lea.vmem [#allocation11], %s289
          %s291 = smul.u32 4, %s27
          %s293 = ssub.s32 4096, 4096
          %294 = vsyncadd %s287, %s293
          %s295 = smul.addr %s291, 64
          %s296 = scalar_lea.hbm %s5, %s295
          %s297 = sshll.u32 %s290, 4
          %s298 = int_to_ptr.vmem [resolvable:$true] %s297
          %303 = dma.hbm_to_vmem [thread:$0]  %s296, 4096, %s298, %s287, 512, 256, 16
        $region40: #{tpu_custom_call.1} parent=35 // pred_fallthru
          _
        // Predicated region
        $region41: #{tpu_custom_call.1} parent=35 // pred_check
          %p304 = pneg %p187
        $region42: #{tpu_custom_call.1} parent=35 // pred_check_branch
          %306 = sbr.rel (%p304) target = $region44
        $region43: #{tpu_custom_call.1} parent=35 // pred_region
          %s307 = smul.u32 4, %s27
          %p308 = scmp.lt.s32.totalorder %s307, 7
          %s309 = scalar_select %p308, %s307, 7
          %s310 = scalar_lea.vmem %s6, %s309
          %s311 = smul.u32 4, %s27
        $region44: #{tpu_custom_call.1} parent=35 // pred_fallthru
          _
      $region36: #{tpu_custom_call.1} parent=5 // pred_fallthru
        _
      %p312 = scmp.le.s32.totalorder 1, %s19
      %p313 = scmp.lt.s32.totalorder %s19, 3
      %p314 = pnand %p312, %p313
      %p315 = pneg %p314
      // Predicated region
      $region45: #{tpu_custom_call.1} parent=5 // pred_check
        _
      $region46: #{tpu_custom_call.1} parent=5 // pred_check_branch
        %317 = sbr.rel (%p314) target = $region48
      $region47: #{tpu_custom_call.1} parent=5 // pred_region
        %s318 = ssub.s32 %s19, 1
        // Predicated region
        $region49: #{tpu_custom_call.1} parent=47 // pred_check
          %p319 = pneg %p57
        $region50: #{tpu_custom_call.1} parent=47 // pred_check_branch
          %321 = sbr.rel (%p319) target = $region52
        $region51: #{tpu_custom_call.1} parent=47 // pred_region
          %322 = dma.done [#allocation6], 64
        $region52: #{tpu_custom_call.1} parent=47 // pred_fallthru
          _
        // Predicated region
        $region53: #{tpu_custom_call.1} parent=47 // pred_check
          %p323 = pneg %p78
        $region54: #{tpu_custom_call.1} parent=47 // pred_check_branch
          %325 = sbr.rel (%p323) target = $region56
        $region55: #{tpu_custom_call.1} parent=47 // pred_region
          %326 = dma.done [#allocation9], 1024
        $region56: #{tpu_custom_call.1} parent=47 // pred_fallthru
          _
        // Predicated region
        $region57: #{tpu_custom_call.1} parent=47 // pred_check
          %p327 = pneg %p120
        $region58: #{tpu_custom_call.1} parent=47 // pred_check_branch
          %329 = sbr.rel (%p327) target = $region60
        $region59: #{tpu_custom_call.1} parent=47 // pred_region
          %330 = dma.done [#allocation9], 1024
        $region60: #{tpu_custom_call.1} parent=47 // pred_fallthru
          _
        %s331 = sand.u32 %s154, 1
        %s332 = scalar_lea.sflag [#allocation12], %s331
        %s333 = sand.u32 %s154, 1
        %s334 = smul.addr %s333, 256
        %s335 = scalar_lea.vmem [#allocation11], %s334
        // Predicated region
        $region61: #{tpu_custom_call.1} parent=47 // pred_check
          %p336 = pneg %p167
        $region62: #{tpu_custom_call.1} parent=47 // pred_check_branch
          %338 = sbr.rel (%p336) target = $region64
        $region63: #{tpu_custom_call.1} parent=47 // pred_region
          %339 = dma.done %s332, 4096
        $region64: #{tpu_custom_call.1} parent=47 // pred_fallthru
          _
        %p340 = pneg %p57
        %p341 = pneg %p54
        %p342 = pneg %p78
        %p343 = pneg %p75
        %p344 = pneg %p99
        %p345 = pneg %p96
        %p346 = pneg %p120
        %p347 = pneg %p117
        %p348 = pneg %p141
        %p349 = pneg %p138
        %s350 = sand.u32 %s154, 1
        %s351 = scalar_lea.sflag [#allocation12], %s350
        %s352 = sand.u32 %s154, 1
        %s353 = smul.addr %s352, 256
        %s354 = scalar_lea.vmem [#allocation11], %s353
        %p355 = pneg %p167
        %p356 = pneg %p164
        %s357 = smul.u32 4, %s29
        %p358 = scmp.lt.s32.totalorder %s357, 7
        %s359 = scalar_select %p358, %s357, 7
        %s360 = scalar_lea.vmem %s6, %s359
        %p361 = pneg %p193
        %p362 = pneg %p190
        %p363 = pneg %p219
        %p364 = pneg %p216
        %s365 = smul.u32 4, %s29
        %s366 = smul.u32 4, %s29
        %p367 = scmp.lt.s32.totalorder %s366, 7
        %s368 = scalar_select %p367, %s366, 7
        %s369 = scalar_lea.vmem %s6, %s368
        %s370 = smul.u32 4, %s29
        %p372 = scmp.eq.s32.totalorder %s29, 0
        // Predicated region
        $region65: #{tpu_custom_call.1} parent=47 // pred_check
          %p373 = pneg %p372
        $region66: #{tpu_custom_call.1} parent=47 // pred_check_branch
          %375 = sbr.rel (%p373) target = $region68
        $region67: #{tpu_custom_call.1} parent=47 // pred_region
          %v376 = vld [vmem:[#allocation5] sm:$0xf]
          %v377 = vld [vmem:[#allocation8] sm:$0xf]
          %v378 = vld [vmem:[#allocation8 + $0x4] sm:$0xf]
          %v379 = vld [vmem:[#allocation8 + $0x8] sm:$0xf]
          %v380 = vld [vmem:[#allocation8 + $0xc] sm:$0xf]
          %v381 = vld [vmem:[#allocation8 + $0x10] sm:$0xf]
          %v382 = vld [vmem:[#allocation8 + $0x14] sm:$0xf]
          %v383 = vld [vmem:[#allocation8 + $0x18] sm:$0xf]
          %v384 = vld [vmem:[#allocation8 + $0x1c] sm:$0xf]
          %v385 = vld [vmem:[#allocation8 + $0x20] sm:$0xf]
          %v386 = vld [vmem:[#allocation8 + $0x24] sm:$0xf]
          %v387 = vld [vmem:[#allocation8 + $0x28] sm:$0xf]
          %v388 = vld [vmem:[#allocation8 + $0x2c] sm:$0xf]
          %v389 = vld [vmem:[#allocation8 + $0x30] sm:$0xf]
          %v390 = vld [vmem:[#allocation8 + $0x34] sm:$0xf]
          %v391 = vld [vmem:[#allocation8 + $0x38] sm:$0xf]
          %v392 = vld [vmem:[#allocation8 + $0x3c] sm:$0xf]
          %v393 = vld [vmem:[%s2] sm:$0x1]
          %v395 = vlaneseq
          %v396 = vshrl.u32 %v395, 7
          %v397 = vsub.s32 0, %v396
          %v398 = vrot.slane %v393, %v397
          %v416 = vunpack.c.l.b16 %v377
          %v417 = vunpack.c.l.b16 %v378
          %v418 = vunpack.c.l.b16 %v379
          %v419 = vunpack.c.l.b16 %v380
          %v420 = vunpack.c.l.b16 %v381
          %v421 = vunpack.c.l.b16 %v382
          %v422 = vunpack.c.l.b16 %v383
          %v423 = vunpack.c.l.b16 %v384
          %v424 = vunpack.c.l.b16 %v385
          %v425 = vunpack.c.l.b16 %v386
          %v426 = vunpack.c.l.b16 %v387
          %v427 = vunpack.c.l.b16 %v388
          %v428 = vunpack.c.l.b16 %v389
          %v429 = vunpack.c.l.b16 %v390
          %v430 = vunpack.c.l.b16 %v391
          %v431 = vunpack.c.l.b16 %v392
          %v432 = vpack.c.b16 %v417, %v416
          %v433 = vpack.c.b16 %v419, %v418
          %v434 = vpack.c.b16 %v421, %v420
          %v435 = vpack.c.b16 %v423, %v422
          %v436 = vpack.c.b16 %v425, %v424
          %v437 = vpack.c.b16 %v427, %v426
          %v438 = vpack.c.b16 %v429, %v428
          %v439 = vpack.c.b16 %v431, %v430
          %448 = vmatprep.subr.bf16.mxu0 0
          %449 = vmatpush1.bf16.msra.mxu0 %v439
          %450 = vmatprep.subr.bf16.mxu0 0
          %451 = vmatpush1.bf16.msra.mxu0 %v438
          %452 = vmatprep.subr.bf16.mxu0 0
          %453 = vmatpush1.bf16.msra.mxu0 %v437
          %454 = vmatprep.subr.bf16.mxu0 0
          %455 = vmatpush1.bf16.msra.mxu0 %v436
          %456 = vmatprep.subr.bf16.mxu0 0
          %457 = vmatpush1.bf16.msra.mxu0 %v435
          %458 = vmatprep.subr.bf16.mxu0 0
          %459 = vmatpush1.bf16.msra.mxu0 %v434
          %460 = vmatprep.subr.bf16.mxu0 0
          %461 = vmatpush1.bf16.msra.mxu0 %v433
          %462 = vmatprep.subr.bf16.mxu0 0
          %463 = vmatpush1.bf16.msra.mxu0 %v432
          %464 = vmatprep.subr.bf16.mxu0 0
          %465 = vmatpush2.bf16.msra.mxu0 0
          %466 = vmatprep.subr.bf16.mxu0 0
          %467 = vmatpush2.bf16.msra.mxu0 0
          %468 = vmatprep.subr.bf16.mxu0 0
          %469 = vmatpush2.bf16.msra.mxu0 0
          %470 = vmatprep.subr.bf16.mxu0 0
          %471 = vmatpush2.bf16.msra.mxu0 0
          %472 = vmatprep.subr.bf16.mxu0 0
          %473 = vmatpush2.bf16.msra.mxu0 0
          %474 = vmatprep.subr.bf16.mxu0 0
          %475 = vmatpush2.bf16.msra.mxu0 0
          %476 = vmatprep.subr.bf16.mxu0 0
          %477 = vmatpush2.bf16.msra.mxu0 0
          %478 = vmatprep.subr.bf16.mxu0 0
          %479 = vmatpush2.bf16.msra.mxu0 0
          %480 = vmatprep.mubr.bf16.mxu0 0
          %481 = vmatmul.mubr.bf16.gmra.mxu0 %v376
          %v482 = vpop.f32.mrf.mxu0
          %v483 = vadd.f32 %v398, %v482
          %v484 = vpop.f32.mrf.mxu0
          %v485 = vpop.f32.mrf.mxu0
          %v486 = vpop.f32.mrf.mxu0
          %487 = vdwg.mxu0
          %v488 = vpack.c.bf16 %v483, %v483
          %v489 = vld [vmem:[#allocation10] sm:$0xf]
          %v490 = vld [vmem:[#allocation10 + $0x4] sm:$0xf]
          %v491 = vld [vmem:[#allocation10 + $0x8] sm:$0xf]
          %v492 = vld [vmem:[#allocation10 + $0xc] sm:$0xf]
          %v493 = vld [vmem:[#allocation10 + $0x10] sm:$0xf]
          %v494 = vld [vmem:[#allocation10 + $0x14] sm:$0xf]
          %v495 = vld [vmem:[#allocation10 + $0x18] sm:$0xf]
          %v496 = vld [vmem:[#allocation10 + $0x1c] sm:$0xf]
          %v497 = vld [vmem:[#allocation10 + $0x20] sm:$0xf]
          %v498 = vld [vmem:[#allocation10 + $0x24] sm:$0xf]
          %v499 = vld [vmem:[#allocation10 + $0x28] sm:$0xf]
          %v500 = vld [vmem:[#allocation10 + $0x2c] sm:$0xf]
          %v501 = vld [vmem:[#allocation10 + $0x30] sm:$0xf]
          %v502 = vld [vmem:[#allocation10 + $0x34] sm:$0xf]
          %v503 = vld [vmem:[#allocation10 + $0x38] sm:$0xf]
          %v504 = vld [vmem:[#allocation10 + $0x3c] sm:$0xf]
          %v505 = vld [vmem:[%s4] sm:$0x1]
          %v507 = vlaneseq
          %v508 = vshrl.u32 %v507, 7
          %v509 = vsub.s32 0, %v508
          %v510 = vrot.slane %v505, %v509
          %v528 = vunpack.c.l.b16 %v489
          %v529 = vunpack.c.l.b16 %v490
          %v530 = vunpack.c.l.b16 %v491
          %v531 = vunpack.c.l.b16 %v492
          %v532 = vunpack.c.l.b16 %v493
          %v533 = vunpack.c.l.b16 %v494
          %v534 = vunpack.c.l.b16 %v495
          %v535 = vunpack.c.l.b16 %v496
          %v536 = vunpack.c.l.b16 %v497
          %v537 = vunpack.c.l.b16 %v498
          %v538 = vunpack.c.l.b16 %v499
          %v539 = vunpack.c.l.b16 %v500
          %v540 = vunpack.c.l.b16 %v501
          %v541 = vunpack.c.l.b16 %v502
          %v542 = vunpack.c.l.b16 %v503
          %v543 = vunpack.c.l.b16 %v504
          %v544 = vpack.c.b16 %v529, %v528
          %v545 = vpack.c.b16 %v531, %v530
          %v546 = vpack.c.b16 %v533, %v532
          %v547 = vpack.c.b16 %v535, %v534
          %v548 = vpack.c.b16 %v537, %v536
          %v549 = vpack.c.b16 %v539, %v538
          %v550 = vpack.c.b16 %v541, %v540
          %v551 = vpack.c.b16 %v543, %v542
          %560 = vmatprep.subr.bf16.mxu0 0
          %561 = vmatpush1.bf16.msra.mxu0 %v551
          %562 = vmatprep.subr.bf16.mxu0 0
          %563 = vmatpush1.bf16.msra.mxu0 %v550
          %564 = vmatprep.subr.bf16.mxu0 0
          %565 = vmatpush1.bf16.msra.mxu0 %v549
          %566 = vmatprep.subr.bf16.mxu0 0
          %567 = vmatpush1.bf16.msra.mxu0 %v548
          %568 = vmatprep.subr.bf16.mxu0 0
          %569 = vmatpush1.bf16.msra.mxu0 %v547
          %570 = vmatprep.subr.bf16.mxu0 0
          %571 = vmatpush1.bf16.msra.mxu0 %v546
          %572 = vmatprep.subr.bf16.mxu0 0
          %573 = vmatpush1.bf16.msra.mxu0 %v545
          %574 = vmatprep.subr.bf16.mxu0 0
          %575 = vmatpush1.bf16.msra.mxu0 %v544
          %576 = vmatprep.subr.bf16.mxu0 0
          %577 = vmatpush2.bf16.msra.mxu0 0
          %578 = vmatprep.subr.bf16.mxu0 0
          %579 = vmatpush2.bf16.msra.mxu0 0
          %580 = vmatprep.subr.bf16.mxu0 0
          %581 = vmatpush2.bf16.msra.mxu0 0
          %582 = vmatprep.subr.bf16.mxu0 0
          %583 = vmatpush2.bf16.msra.mxu0 0
          %584 = vmatprep.subr.bf16.mxu0 0
          %585 = vmatpush2.bf16.msra.mxu0 0
          %586 = vmatprep.subr.bf16.mxu0 0
          %587 = vmatpush2.bf16.msra.mxu0 0
          %588 = vmatprep.subr.bf16.mxu0 0
          %589 = vmatpush2.bf16.msra.mxu0 0
          %590 = vmatprep.subr.bf16.mxu0 0
          %591 = vmatpush2.bf16.msra.mxu0 0
          %592 = vmatprep.mubr.bf16.mxu0 0
          %593 = vmatmul.mubr.bf16.gmra.mxu0 %v488
          %v594 = vpop.f32.mrf.mxu0
          %v595 = vadd.f32 %v510, %v594
          %v596 = vpop.f32.mrf.mxu0
          %v597 = vpop.f32.mrf.mxu0
          %v598 = vpop.f32.mrf.mxu0
          %599 = vdwg.mxu0
          %600 = vst [vmem:[#allocation2] sm:$0xff] %v595
          %vm601 = vcmask 7168
          %602 = vst.msk [vmem:[#allocation3] sm:$0xff] %vm601, -inf
          %603 = vst.msk [vmem:[#allocation4] sm:$0xff] %vm601, 0.0
        $region68: #{tpu_custom_call.1} parent=47 // pred_fallthru
          _
        %v604 = vld [vmem:[#allocation2] sm:$0xff]
        %v605 = vpack.c.bf16 %v604, %v604
        %v606 = vld [vmem:[%s335] sm:$0xff]
        %v607 = vld [vmem:[%s335 + $0x8] sm:$0xff]
        %v608 = vld [vmem:[%s335 + $0x10] sm:$0xff]
        %v609 = vld [vmem:[%s335 + $0x18] sm:$0xff]
        %v610 = vld [vmem:[%s335 + $0x20] sm:$0xff]
        %v611 = vld [vmem:[%s335 + $0x28] sm:$0xff]
        %v612 = vld [vmem:[%s335 + $0x30] sm:$0xff]
        %v613 = vld [vmem:[%s335 + $0x38] sm:$0xff]
        %v614 = vld [vmem:[%s335 + $0x40] sm:$0xff]
        %v615 = vld [vmem:[%s335 + $0x48] sm:$0xff]
        %v616 = vld [vmem:[%s335 + $0x50] sm:$0xff]
        %v617 = vld [vmem:[%s335 + $0x58] sm:$0xff]
        %v618 = vld [vmem:[%s335 + $0x60] sm:$0xff]
        %v619 = vld [vmem:[%s335 + $0x68] sm:$0xff]
        %v620 = vld [vmem:[%s335 + $0x70] sm:$0xff]
        %v621 = vld [vmem:[%s335 + $0x78] sm:$0xff]
        %v622 = vld [vmem:[%s335 + $0x80] sm:$0xff]
        %v623 = vld [vmem:[%s335 + $0x88] sm:$0xff]
        %v624 = vld [vmem:[%s335 + $0x90] sm:$0xff]
        %v625 = vld [vmem:[%s335 + $0x98] sm:$0xff]
        %v626 = vld [vmem:[%s335 + $0xa0] sm:$0xff]
        %v627 = vld [vmem:[%s335 + $0xa8] sm:$0xff]
        %v628 = vld [vmem:[%s335 + $0xb0] sm:$0xff]
        %v629 = vld [vmem:[%s335 + $0xb8] sm:$0xff]
        %v630 = vld [vmem:[%s335 + $0xc0] sm:$0xff]
        %v631 = vld [vmem:[%s335 + $0xc8] sm:$0xff]
        %v632 = vld [vmem:[%s335 + $0xd0] sm:$0xff]
        %v633 = vld [vmem:[%s335 + $0xd8] sm:$0xff]
        %v634 = vld [vmem:[%s335 + $0xe0] sm:$0xff]
        %v635 = vld [vmem:[%s335 + $0xe8] sm:$0xff]
        %v636 = vld [vmem:[%s335 + $0xf0] sm:$0xff]
        %v637 = vld [vmem:[%s335 + $0xf8] sm:$0xff]
        %v638 = vld [vmem:[%s369] sm:$0xf]
        %v640 = vlaneseq
        %v641 = vshrl.u32 %v640, 7
        %v642 = vsub.s32 0, %v641
        %v643 = vrot.slane %v638, %v642
        %v644 = vlaneseq
        %v645 = vshrl.u32 %v644, 7
        %v646 = vsub.s32 1, %v645
        %v647 = vrot.slane %v638, %v646
        %v648 = vlaneseq
        %v649 = vshrl.u32 %v648, 7
        %v650 = vsub.s32 2, %v649
        %v651 = vrot.slane %v638, %v650
        %v652 = vlaneseq
        %v653 = vshrl.u32 %v652, 7
        %v654 = vsub.s32 3, %v653
        %v655 = vrot.slane %v638, %v654
        %v692 = vunpack.c.l.b16 %v606
        %v693 = vunpack.c.h.b16 %v606
        %v694 = vunpack.c.l.b16 %v607
        %v695 = vunpack.c.h.b16 %v607
        %v696 = vunpack.c.l.b16 %v608
        %v697 = vunpack.c.h.b16 %v608
        %v698 = vunpack.c.l.b16 %v609
        %v699 = vunpack.c.h.b16 %v609
        %v700 = vunpack.c.l.b16 %v610
        %v701 = vunpack.c.h.b16 %v610
        %v702 = vunpack.c.l.b16 %v611
        %v703 = vunpack.c.h.b16 %v611
        %v704 = vunpack.c.l.b16 %v612
        %v705 = vunpack.c.h.b16 %v612
        %v706 = vunpack.c.l.b16 %v613
        %v707 = vunpack.c.h.b16 %v613
        %v708 = vunpack.c.l.b16 %v614
        %v709 = vunpack.c.h.b16 %v614
        %v710 = vunpack.c.l.b16 %v615
        %v711 = vunpack.c.h.b16 %v615
        %v712 = vunpack.c.l.b16 %v616
        %v713 = vunpack.c.h.b16 %v616
        %v714 = vunpack.c.l.b16 %v617
        %v715 = vunpack.c.h.b16 %v617
        %v716 = vunpack.c.l.b16 %v618
        %v717 = vunpack.c.h.b16 %v618
        %v718 = vunpack.c.l.b16 %v619
        %v719 = vunpack.c.h.b16 %v619
        %v720 = vunpack.c.l.b16 %v620
        %v721 = vunpack.c.h.b16 %v620
        %v722 = vunpack.c.l.b16 %v621
        %v723 = vunpack.c.h.b16 %v621
        %v724 = vunpack.c.l.b16 %v622
        %v725 = vunpack.c.h.b16 %v622
        %v726 = vunpack.c.l.b16 %v623
        %v727 = vunpack.c.h.b16 %v623
        %v728 = vunpack.c.l.b16 %v624
        %v729 = vunpack.c.h.b16 %v624
        %v730 = vunpack.c.l.b16 %v625
        %v731 = vunpack.c.h.b16 %v625
        %v732 = vunpack.c.l.b16 %v626
        %v733 = vunpack.c.h.b16 %v626
        %v734 = vunpack.c.l.b16 %v627
        %v735 = vunpack.c.h.b16 %v627
        %v736 = vunpack.c.l.b16 %v628
        %v737 = vunpack.c.h.b16 %v628
        %v738 = vunpack.c.l.b16 %v629
        %v739 = vunpack.c.h.b16 %v629
        %v740 = vunpack.c.l.b16 %v630
        %v741 = vunpack.c.h.b16 %v630
        %v742 = vunpack.c.l.b16 %v631
        %v743 = vunpack.c.h.b16 %v631
        %v744 = vunpack.c.l.b16 %v632
        %v745 = vunpack.c.h.b16 %v632
        %v746 = vunpack.c.l.b16 %v633
        %v747 = vunpack.c.h.b16 %v633
        %v748 = vunpack.c.l.b16 %v634
        %v749 = vunpack.c.h.b16 %v634
        %v750 = vunpack.c.l.b16 %v635
        %v751 = vunpack.c.h.b16 %v635
        %v752 = vunpack.c.l.b16 %v636
        %v753 = vunpack.c.h.b16 %v636
        %v754 = vunpack.c.l.b16 %v637
        %v755 = vunpack.c.h.b16 %v637
        %v756 = vpack.c.b16 %v696, %v692
        %v757 = vpack.c.b16 %v697, %v693
        %v758 = vpack.c.b16 %v698, %v694
        %v759 = vpack.c.b16 %v699, %v695
        %v760 = vpack.c.b16 %v704, %v700
        %v761 = vpack.c.b16 %v705, %v701
        %v762 = vpack.c.b16 %v706, %v702
        %v763 = vpack.c.b16 %v707, %v703
        %v764 = vpack.c.b16 %v712, %v708
        %v765 = vpack.c.b16 %v713, %v709
        %v766 = vpack.c.b16 %v714, %v710
        %v767 = vpack.c.b16 %v715, %v711
        %v768 = vpack.c.b16 %v720, %v716
        %v769 = vpack.c.b16 %v721, %v717
        %v770 = vpack.c.b16 %v722, %v718
        %v771 = vpack.c.b16 %v723, %v719
        %v772 = vpack.c.b16 %v728, %v724
        %v773 = vpack.c.b16 %v729, %v725
        %v774 = vpack.c.b16 %v730, %v726
        %v775 = vpack.c.b16 %v731, %v727
        %v776 = vpack.c.b16 %v736, %v732
        %v777 = vpack.c.b16 %v737, %v733
        %v778 = vpack.c.b16 %v738, %v734
        %v779 = vpack.c.b16 %v739, %v735
        %v780 = vpack.c.b16 %v744, %v740
        %v781 = vpack.c.b16 %v745, %v741
        %v782 = vpack.c.b16 %v746, %v742
        %v783 = vpack.c.b16 %v747, %v743
        %v784 = vpack.c.b16 %v752, %v748
        %v785 = vpack.c.b16 %v753, %v749
        %v786 = vpack.c.b16 %v754, %v750
        %v787 = vpack.c.b16 %v755, %v751
        %820 = vmatprep.subr.bf16.mxu0 %v785
        %821 = vmatpush1.bf16.msra.mxu0 %v784
        %822 = vmatprep.subr.bf16.mxu0 %v781
        %823 = vmatpush1.bf16.msra.mxu0 %v780
        %824 = vmatprep.subr.bf16.mxu0 %v777
        %825 = vmatpush1.bf16.msra.mxu0 %v776
        %826 = vmatprep.subr.bf16.mxu0 %v773
        %827 = vmatpush1.bf16.msra.mxu0 %v772
        %828 = vmatprep.subr.bf16.mxu0 %v769
        %829 = vmatpush1.bf16.msra.mxu0 %v768
        %830 = vmatprep.subr.bf16.mxu0 %v765
        %831 = vmatpush1.bf16.msra.mxu0 %v764
        %832 = vmatprep.subr.bf16.mxu0 %v761
        %833 = vmatpush1.bf16.msra.mxu0 %v760
        %834 = vmatprep.subr.bf16.mxu0 %v757
        %835 = vmatpush1.bf16.msra.mxu0 %v756
        %836 = vmatprep.subr.bf16.mxu0 0
        %837 = vmatpush2.bf16.msra.mxu0 0
        %838 = vmatprep.subr.bf16.mxu0 0
        %839 = vmatpush2.bf16.msra.mxu0 0
        %840 = vmatprep.subr.bf16.mxu0 0
        %841 = vmatpush2.bf16.msra.mxu0 0
        %842 = vmatprep.subr.bf16.mxu0 0
        %843 = vmatpush2.bf16.msra.mxu0 0
        %844 = vmatprep.subr.bf16.mxu0 0
        %845 = vmatpush2.bf16.msra.mxu0 0
        %846 = vmatprep.subr.bf16.mxu0 0
        %847 = vmatpush2.bf16.msra.mxu0 0
        %848 = vmatprep.subr.bf16.mxu0 0
        %849 = vmatpush2.bf16.msra.mxu0 0
        %850 = vmatprep.subr.bf16.mxu0 0
        %851 = vmatpush2.bf16.msra.mxu0 0
        %852 = vmatprep.mubr.bf16.mxu0 0
        %853 = vmatmul.mubr.bf16.gmra.mxu0 %v605
        %v854 = vpop.f32.mrf.mxu0
        %v855 = vadd.f32 %v643, %v854
        %v856 = vpop.f32.mrf.mxu0
        %v857 = vadd.f32 %v647, %v856
        %v858 = vpop.f32.mrf.mxu0
        %v859 = vpop.f32.mrf.mxu0
        %860 = vdwg.mxu0
        %861 = vmatprep.subr.bf16.mxu0 %v787
        %862 = vmatpush1.bf16.msra.mxu0 %v786
        %863 = vmatprep.subr.bf16.mxu0 %v783
        %864 = vmatpush1.bf16.msra.mxu0 %v782
        %865 = vmatprep.subr.bf16.mxu0 %v779
        %866 = vmatpush1.bf16.msra.mxu0 %v778
        %867 = vmatprep.subr.bf16.mxu0 %v775
        %868 = vmatpush1.bf16.msra.mxu0 %v774
        %869 = vmatprep.subr.bf16.mxu0 %v771
        %870 = vmatpush1.bf16.msra.mxu0 %v770
        %871 = vmatprep.subr.bf16.mxu0 %v767
        %872 = vmatpush1.bf16.msra.mxu0 %v766
        %873 = vmatprep.subr.bf16.mxu0 %v763
        %874 = vmatpush1.bf16.msra.mxu0 %v762
        %875 = vmatprep.subr.bf16.mxu0 %v759
        %876 = vmatpush1.bf16.msra.mxu0 %v758
        %877 = vmatprep.subr.bf16.mxu0 0
        %878 = vmatpush2.bf16.msra.mxu0 0
        %879 = vmatprep.subr.bf16.mxu0 0
        %880 = vmatpush2.bf16.msra.mxu0 0
        %881 = vmatprep.subr.bf16.mxu0 0
        %882 = vmatpush2.bf16.msra.mxu0 0
        %883 = vmatprep.subr.bf16.mxu0 0
        %884 = vmatpush2.bf16.msra.mxu0 0
        %885 = vmatprep.subr.bf16.mxu0 0
        %886 = vmatpush2.bf16.msra.mxu0 0
        %887 = vmatprep.subr.bf16.mxu0 0
        %888 = vmatpush2.bf16.msra.mxu0 0
        %889 = vmatprep.subr.bf16.mxu0 0
        %890 = vmatpush2.bf16.msra.mxu0 0
        %891 = vmatprep.subr.bf16.mxu0 0
        %892 = vmatpush2.bf16.msra.mxu0 0
        %893 = vmatprep.mubr.bf16.mxu0 0
        %894 = vmatmul.mubr.bf16.gmra.mxu0 %v605
        %v895 = vpop.f32.mrf.mxu0
        %v896 = vadd.f32 %v651, %v895
        %v897 = vpop.f32.mrf.mxu0
        %v898 = vadd.f32 %v655, %v897
        %v899 = vpop.f32.mrf.mxu0
        %v900 = vpop.f32.mrf.mxu0
        %901 = vdwg.mxu0
        %s902 = smul.u32 %s29, 512
        %v903 = vlaneseq
        %v904 = vand.u32 %v903, 127
        %v905 = vadd.s32 %v904, 128
        %v906 = vadd.s32 %v904, 256
        %v907 = vadd.s32 %v904, 384
        %v908 = vstv %s902
        %v909 = vadd.s32 %v908, %v904
        %v910 = vadd.s32 %v908, %v905
        %v911 = vadd.s32 %v908, %v906
        %v912 = vadd.s32 %v908, %v907
        %vm913 = vcmp.lt.s32.totalorder %v909, 1000
        %vm914 = vcmp.lt.s32.totalorder %v910, 1000
        %vm915 = vcmp.lt.s32.totalorder %v911, 1000
        %vm916 = vcmp.lt.s32.totalorder %v912, 1000
        %v917 = vsel %vm913, %v855, -inf
        %v918 = vsel %vm914, %v857, -inf
        %v919 = vsel %vm915, %v896, -inf
        %v920 = vsel %vm916, %v898, -inf
        %v921 = vmax.f32 %v917, %v918
        %v922 = vmax.f32 %v919, %v920
        %v923 = vmax.f32 %v921, %v922
        %924 = vmax.xlane.f32.xlu0 %v923
        %v925 = vpop.xlane.xlu0 %924
        %v926 = vld [vmem:[#allocation3] sm:$0xff]
        %v927 = vmax.f32 %v926, %v925
        %v928 = vld [vmem:[#allocation4] sm:$0xff]
        %v929 = vsub.f32 %v926, %v927
        %v930 = vmul.f32 %v929, 1.442695
        %v931 = vpow.pop %v930
        %v932 = vmul.f32 %v928, %v931
        %934 = vset.pattern.permute.xlu0 0
        %935 = vperm.xlu0 %934, %v927
        %v936 = vpop.permute.xlu0 %935
        %v938 = vsub.f32 %v917, %v936
        %v939 = vsub.f32 %v918, %v936
        %v940 = vsub.f32 %v919, %v936
        %v941 = vsub.f32 %v920, %v936
        %v942 = vmul.f32 %v938, 1.442695
        %v943 = vpow.pop %v942
        %v944 = vmul.f32 %v939, 1.442695
        %v945 = vpow.pop %v944
        %v946 = vmul.f32 %v940, 1.442695
        %v947 = vpow.pop %v946
        %v948 = vmul.f32 %v941, 1.442695
        %v949 = vpow.pop %v948
        %v950 = vadd.f32 %v943, %v945
        %v951 = vadd.f32 %v950, %v947
        %v952 = vadd.f32 %v951, %v949
        %953 = vadd.xlane.f32.xlu0 %v952
        %v954 = vpop.xlane.xlu0 %953
        %v955 = vadd.f32 %v932, %v954
        %vm956 = vcmask 7168
        %957 = vst.msk [vmem:[#allocation4] sm:$0xff] %vm956, %v955
        %958 = vst.msk [vmem:[#allocation3] sm:$0xff] %vm956, %v927
        %s959 = sshra.s32 %s902, 7
        %s960 = sand.u32 %s902, 127
        %s961 = smul.addr %s959, 8
        %s962 = scalar_lea.vmem [#allocation13], %s961
        %963 = vst [vmem:[%s962] sm:$0xff] %v917
        %964 = vst [vmem:[%s962 + $0x8] sm:$0xff] %v918
        %965 = vst [vmem:[%s962 + $0x10] sm:$0xff] %v919
        %966 = vst [vmem:[%s962 + $0x18] sm:$0xff] %v920
        %p967 = scmp.eq.s32.totalorder %s29, 1
        // Predicated region
        $region69: #{tpu_custom_call.1} parent=47 // pred_check
          %p968 = pneg %p967
        $region70: #{tpu_custom_call.1} parent=47 // pred_check_branch
          %970 = sbr.rel (%p968) target = $region72
        $region71: #{tpu_custom_call.1} parent=47 // pred_region
          %v971 = vld [vmem:[#allocation3] sm:$0xff]
          %v972 = vld [vmem:[#allocation4] sm:$0xff]
          %v973 = vlog2.pop %v972
          %v974 = vmul.f32 %v973, 0.6931472
          %v975 = vadd.f32 %v971, %v974
          %v976 = vld [vmem:[#allocation13] sm:$0xff]
          %v977 = vld [vmem:[#allocation13 + $0x8] sm:$0xff]
          %v978 = vld [vmem:[#allocation13 + $0x10] sm:$0xff]
          %v979 = vld [vmem:[#allocation13 + $0x18] sm:$0xff]
          %v980 = vld [vmem:[#allocation13 + $0x20] sm:$0xff]
          %v981 = vld [vmem:[#allocation13 + $0x28] sm:$0xff]
          %v982 = vld [vmem:[#allocation13 + $0x30] sm:$0xff]
          %v983 = vld [vmem:[#allocation13 + $0x38] sm:$0xff]
          %985 = vset.pattern.permute.xlu0 0
          %986 = vperm.xlu0 %985, %v975
          %v987 = vpop.permute.xlu0 %986
          %v989 = vsub.f32 %v976, %v987
          %v990 = vsub.f32 %v977, %v987
          %v991 = vsub.f32 %v978, %v987
          %v992 = vsub.f32 %v979, %v987
          %v993 = vsub.f32 %v980, %v987
          %v994 = vsub.f32 %v981, %v987
          %v995 = vsub.f32 %v982, %v987
          %v996 = vsub.f32 %v983, %v987
          %997 = vst [vmem:[#allocation13] sm:$0xff] %v989
          %998 = vst [vmem:[#allocation13 + $0x8] sm:$0xff] %v990
          %999 = vst [vmem:[#allocation13 + $0x10] sm:$0xff] %v991
          %1000 = vst [vmem:[#allocation13 + $0x18] sm:$0xff] %v992
          %1001 = vst [vmem:[#allocation13 + $0x20] sm:$0xff] %v993
          %1002 = vst [vmem:[#allocation13 + $0x28] sm:$0xff] %v994
          %1003 = vst [vmem:[#allocation13 + $0x30] sm:$0xff] %v995
          %1004 = vst [vmem:[#allocation13 + $0x38] sm:$0xff] %v996
        $region72: #{tpu_custom_call.1} parent=47 // pred_fallthru
          _
        // Predicated region
        $region73: #{tpu_custom_call.1} parent=47 // pred_check
          %p1005 = pneg %p216
        $region74: #{tpu_custom_call.1} parent=47 // pred_check_branch
          %1007 = sbr.rel (%p1005) target = $region76
        $region75: #{tpu_custom_call.1} parent=47 // pred_region
          %s1009 = ssub.s32 1024, 1024
          %1010 = vsyncadd [#allocation7], %s1009
          %s1011 = smul.addr %s28, 8
          %s1012 = smul.addr %s1011, 128
          %s1013 = scalar_lea.hbm %s7, %s1012
          %s1015 = sshll.u32 [#allocation13], 4
          %s1016 = int_to_ptr.vmem [resolvable:$true] %s1015
          %1018 = dma.vmem_to_hbm [thread:$0]  %s1016, 1024, %s1013, [#allocation7]
        $region76: #{tpu_custom_call.1} parent=47 // pred_fallthru
          _
        // Predicated region
        $region77: #{tpu_custom_call.1} parent=47 // pred_check
          %p1019 = pneg %p216
        $region78: #{tpu_custom_call.1} parent=47 // pred_check_branch
          %1021 = sbr.rel (%p1019) target = $region80
        $region79: #{tpu_custom_call.1} parent=47 // pred_region
          %1022 = dma.done [#allocation7], 1024
        $region80: #{tpu_custom_call.1} parent=47 // pred_fallthru
          _
      $region48: #{tpu_custom_call.1} parent=5 // pred_fallthru
        _
      %p1023 = scmp.le.s32.totalorder 2, %s19
      // Predicated region
      $region81: #{tpu_custom_call.1} parent=5 // pred_check
        %p1024 = pneg %p1023
      $region82: #{tpu_custom_call.1} parent=5 // pred_check_branch
        %1026 = sbr.rel (%p1024) target = $region84
      $region83: #{tpu_custom_call.1} parent=5 // pred_region
        %s1027 = ssub.s32 %s19, 2
      $region84: #{tpu_custom_call.1} parent=5 // pred_fallthru
        _
    $region6: #{tpu_custom_call.1} parent=1 // loop_footer
      %s23 = sadd.s32 1, %s19
    $region7: #{tpu_custom_call.1} parent=1 // loop_footer_branch
      %18 = sbr.rel target = $region3
    $region8: #{tpu_custom_call.1} parent=1 // loop_exit
      _
    %1028 = vsyncpa [#allocation6], 1
    %s1029 = scalar_lea.sflag [#allocation6], 1
    %1030 = vsyncpa %s1029, 1
    %1031 = vsyncpa [#allocation9], 1
    %1032 = vsyncpa [#allocation12], 1
    %s1033 = scalar_lea.sflag [#allocation12], 1
    %1034 = vsyncpa %s1033, 1
    %1035 = vsyncpa [#allocation7], 1
    %s1036 = scalar_lea.sflag [#allocation7], 1
    %1037 = vsyncpa %s1036, 1

</llo_original>
